<compile_context>
chip_gen: v6e
topology: v6e:2x2x1
jax: 0.10.0
libtpu: 0.0.40
codegen_flags: <defaults>
</compile_context>

<pallas_src>
import functools

import jax
import jax.numpy as jnp
from jax.experimental import pallas as pl
from jax.experimental.pallas import tpu as pltpu


def _sepconv_kernel(x_ref, wdw_ref, wpw_ref, bp_ref, o_ref, *,
                    kernel, stride, nb, l_out_d, use_bf16_matmul):
    # x_ref  : (NB, C, Lpad_d)   lane-dense padded input slab for this block
    # wdw_ref: (C, K)            depthwise weights (groups == C)
    # wpw_ref: (NO, C)           pointwise (1x1 conv) weights
    # bp_ref : (NO, 1)           fused bias  (bpw + wpw @ bdw)
    # o_ref  : (NB, NO, Lout_d)  lane-dense output block
    c = wdw_ref.shape[0]
    w = wdw_ref[...].astype(jnp.float32)                  # (C, K)

    # Depthwise: small static tap loop (unrolled), ref-level strided windows.
    # Kept in f32 on the VPU (v5e has no bf16 VPU).
    acc = jnp.zeros((nb, c, l_out_d), jnp.float32)
    for k in range(kernel):
        if stride == 1:
            xs = x_ref[:, :, pl.ds(k, l_out_d)]
        else:
            xs = x_ref[:, :, pl.ds(k, l_out_d, stride=stride)]
        acc = acc + xs.astype(jnp.float32) * w[None, :, k:k + 1]

    # Pointwise 1x1 conv == channel-mixing matmul on the MXU, per batch elem.
    mm_dtype = jnp.bfloat16 if use_bf16_matmul else jnp.float32
    wp = wpw_ref[...].astype(mm_dtype)                    # (NO, C)
    bp = bp_ref[...].astype(jnp.float32)                  # (NO, 1)
    for n in range(nb):                                   # static, nb <= 8
        out_n = jnp.dot(wp, acc[n].astype(mm_dtype),
                        preferred_element_type=jnp.float32)   # (NO, Lout_d)
        o_ref[n] = (out_n + bp).astype(o_ref.dtype)


def sep_conv1d(x, wdw, bdw, wpw, bpw, *, stride, pad, use_bf16_matmul=False):
    """x: (N, C, L). Returns (N, NO, Lout) == pointwise(depthwise(x))."""
    n, c, l = x.shape
    no = wpw.shape[0]
    k = wdw.shape[1]
    l_out = (l + 2 * pad - k) // stride + 1

    # Lane-dense tile sizes (multiples of 128).
    l_out_d = ((l_out + 127) // 128) * 128
    lp_needed = stride * (l_out_d - 1) + k                # last tap of last out
    lp_d = ((max(lp_needed, l + pad) + 127) // 128) * 128

    # Batch block: keep >=2 grid steps when N>=2 (2-TC sharding on v7x), cap
    # unroll at 8 and keep per-step VMEM footprint small (v7x scoped VMEM).
    bytes_per_elem = 4 * (c * lp_d + (no + c) * l_out_d)
    nb = max(1, min(8,
                    (4 * 1024 * 1024) // max(bytes_per_elem, 1),
                    -(-n // 2)))
    n_blocks = -(-n // nb)
    n_pad = n_blocks * nb

    # One fused pad: batch -> n_pad, conv left pad, lane padding on the right.
    xp = jnp.pad(x, ((0, n_pad - n), (0, 0), (pad, lp_d - l - pad)))

    # Fold depthwise bias into the pointwise bias (pointwise conv is linear).
    bp_fused = (bpw.astype(jnp.float32)
                + wpw.astype(jnp.float32) @ bdw.astype(jnp.float32)
                ).astype(x.dtype)                          # (NO, 1)

    kern = functools.partial(_sepconv_kernel, kernel=k, stride=stride,
                             nb=nb, l_out_d=l_out_d,
                             use_bf16_matmul=use_bf16_matmul)
    out = pl.pallas_call(
        kern,
        out_shape=jax.ShapeDtypeStruct((n_pad, no, l_out_d), x.dtype),
        grid=(n_blocks,),
        in_specs=[
            pl.BlockSpec((nb, c, lp_d), lambda i: (i, 0, 0)),   # batch block
            pl.BlockSpec((c, k), lambda i: (0, 0)),             # depthwise W
            pl.BlockSpec((no, c), lambda i: (0, 0)),            # pointwise W
            pl.BlockSpec((no, 1), lambda i: (0, 0)),            # fused bias
        ],
        out_specs=pl.BlockSpec((nb, no, l_out_d), lambda i: (i, 0, 0)),
        compiler_params=pltpu.CompilerParams(
            dimension_semantics=("parallel",)),
    )(xp, wdw, wpw, bp_fused)

    return out[:n, :, :l_out]


if __name__ == "__main__":
    # _SepConv1d(ni=4, no=8, kernel=3, stride=1, pad=1), input (N=2, C=4, L=16)
    N, NI, NO, L, K, STRIDE, PAD = 2, 4, 8, 16, 3, 1, 1

    key = jax.random.PRNGKey(0)
    kx, kwd, kbd, kwp, kbp = jax.random.split(key, 5)
    x = jax.random.normal(kx, (N, NI, L), jnp.float32)
    # Conv1d(ni, ni, K, groups=ni) weight (ni,1,K) squeezed -> (ni, K)
    wdw = 0.1 * jax.random.normal(kwd, (NI, K), jnp.float32)
    bdw = 0.1 * jax.random.normal(kbd, (NI, 1), jnp.float32)
    # Conv1d(ni, no, 1) weight (no,ni,1) squeezed -> (no, ni)
    wpw = 0.1 * jax.random.normal(kwp, (NO, NI), jnp.float32)
    bpw = 0.1 * jax.random.normal(kbp, (NO, 1), jnp.float32)

    out = jax.block_until_ready(
        sep_conv1d(x, wdw, bdw, wpw, bpw, stride=STRIDE, pad=PAD))

    # Reference: grouped conv + 1x1 conv in plain JAX.
    L_OUT = (L + 2 * PAD - K) // STRIDE + 1
    dw_ref = jax.lax.conv_general_dilated(
        x, wdw.reshape(NI, 1, K), window_strides=(STRIDE,),
        padding=[(PAD, PAD)], dimension_numbers=("NCH", "OIH", "NCH"),
        feature_group_count=NI) + bdw.reshape(1, NI, 1)
    ref = jnp.einsum("oc,ncl->nol", wpw, dw_ref) + bpw.reshape(1, NO, 1)

    assert out.shape == (N, NO, L_OUT), out.shape
    assert jnp.allclose(out, ref, atol=1e-4, rtol=1e-4), \
        float(jnp.max(jnp.abs(out - ref)))
    print("KERNEL_OK")
</pallas_src>

<mosaic_0001>
module attributes {stable_mosaic.version = 11 : i64} {
  func.func @_sepconv_kernel(%arg0: i32, %arg1: memref<1x4x256xf32, #tpu.memory_space<vmem>>, %arg2: memref<4x3xf32, #tpu.memory_space<vmem>>, %arg3: memref<8x4xf32, #tpu.memory_space<vmem>>, %arg4: memref<8x1xf32, #tpu.memory_space<vmem>>, %arg5: memref<1x8x128xf32, #tpu.memory_space<vmem>>) attributes {dimension_semantics = [#tpu.dimension_semantics<parallel>], iteration_bounds = array<i64: 2>, scalar_prefetch = 0 : i64, scratch_operands = 0 : i64, tpu.core_type = #tpu.core_type<tc>, window_params = [{transform_indices = @transform_0, window_bounds = array<i64: 1, 4, 256>}, {pipeline_mode = #tpu.pipeline_mode<synchronous>, transform_indices = @transform_1, window_bounds = array<i64: 4, 3>}, {pipeline_mode = #tpu.pipeline_mode<synchronous>, transform_indices = @transform_2, window_bounds = array<i64: 8, 4>}, {pipeline_mode = #tpu.pipeline_mode<synchronous>, transform_indices = @transform_3, window_bounds = array<i64: 8, 1>}, {transform_indices = @transform_4, window_bounds = array<i64: 1, 8, 128>}]} {
    %c0 = arith.constant 0 : index
    %c0_0 = arith.constant 0 : index
    %0 = vector.load %arg2[%c0, %c0_0] : memref<4x3xf32, #tpu.memory_space<vmem>>, vector<4x3xf32>
    %cst = arith.constant 0.000000e+00 : f32
    %1 = vector.broadcast %cst : f32 to vector<1x4x128xf32>
    %c0_1 = arith.constant 0 : index
    %c0_2 = arith.constant 0 : index
    %c0_3 = arith.constant 0 : index
    %2 = vector.load %arg1[%c0_1, %c0_2, %c0_3] : memref<1x4x256xf32, #tpu.memory_space<vmem>>, vector<1x4x128xf32>
    %3 = vector.extract_strided_slice %0 {offsets = [0, 0], sizes = [4, 1], strides = [1, 1]} : vector<4x3xf32> to vector<4x1xf32>
    %4 = vector.shape_cast %3 : vector<4x1xf32> to vector<1x4x1xf32>
    %5 = vector.broadcast %4 : vector<1x4x1xf32> to vector<1x4x128xf32>
    %6 = arith.mulf %2, %5 : vector<1x4x128xf32>
    %7 = arith.addf %1, %6 : vector<1x4x128xf32>
    %c0_4 = arith.constant 0 : index
    %c0_5 = arith.constant 0 : index
    %c1 = arith.constant 1 : index
    %8 = vector.load %arg1[%c0_4, %c0_5, %c1] : memref<1x4x256xf32, #tpu.memory_space<vmem>>, vector<1x4x128xf32>
    %9 = vector.extract_strided_slice %0 {offsets = [0, 1], sizes = [4, 1], strides = [1, 1]} : vector<4x3xf32> to vector<4x1xf32>
    %10 = vector.shape_cast %9 : vector<4x1xf32> to vector<1x4x1xf32>
    %11 = vector.broadcast %10 : vector<1x4x1xf32> to vector<1x4x128xf32>
    %12 = arith.mulf %8, %11 : vector<1x4x128xf32>
    %13 = arith.addf %7, %12 : vector<1x4x128xf32>
    %c0_6 = arith.constant 0 : index
    %c0_7 = arith.constant 0 : index
    %c2 = arith.constant 2 : index
    %14 = vector.load %arg1[%c0_6, %c0_7, %c2] : memref<1x4x256xf32, #tpu.memory_space<vmem>>, vector<1x4x128xf32>
    %15 = vector.extract_strided_slice %0 {offsets = [0, 2], sizes = [4, 1], strides = [1, 1]} : vector<4x3xf32> to vector<4x1xf32>
    %16 = vector.shape_cast %15 : vector<4x1xf32> to vector<1x4x1xf32>
    %17 = vector.broadcast %16 : vector<1x4x1xf32> to vector<1x4x128xf32>
    %18 = arith.mulf %14, %17 : vector<1x4x128xf32>
    %19 = arith.addf %13, %18 : vector<1x4x128xf32>
    %c0_8 = arith.constant 0 : index
    %c0_9 = arith.constant 0 : index
    %20 = vector.load %arg3[%c0_8, %c0_9] : memref<8x4xf32, #tpu.memory_space<vmem>>, vector<8x4xf32>
    %c0_10 = arith.constant 0 : index
    %c0_11 = arith.constant 0 : index
    %21 = vector.load %arg4[%c0_10, %c0_11] : memref<8x1xf32, #tpu.memory_space<vmem>>, vector<8x1xf32>
    %22 = vector.shape_cast %19 : vector<1x4x128xf32> to vector<4x128xf32>
    %cst_12 = arith.constant dense<0.000000e+00> : vector<8x128xf32>
    %23 = tpu.matmul %20, %22, %cst_12 {dimension_numbers = #tpu.dot_dimension_numbers<[1], [0], [0], [1], [0, 0, 1, 1], [], []>} : vector<8x4xf32>, vector<4x128xf32>, vector<8x128xf32> -> vector<8x128xf32>
    %24 = vector.broadcast %21 : vector<8x1xf32> to vector<8x128xf32>
    %25 = arith.addf %23, %24 : vector<8x128xf32>
    %c0_13 = arith.constant 0 : index
    %c0_14 = arith.constant 0 : index
    %c0_15 = arith.constant 0 : index
    %26 = vector.load %arg5[%c0_13, %c0_14, %c0_15] : memref<1x8x128xf32, #tpu.memory_space<vmem>>, vector<1x8x128xf32>
    %27 = vector.shape_cast %26 : vector<1x8x128xf32> to vector<8x128xf32>
    %28 = vector.shape_cast %25 : vector<8x128xf32> to vector<1x8x128xf32>
    tpu.vector_store %arg5[%c0_13, %c0_14, %c0_15], %28 {strides = array<i32>} : memref<1x8x128xf32, #tpu.memory_space<vmem>>, vector<1x8x128xf32>,
    return
  }
  func.func @transform_0(%arg0: i32) -> (i32, i32, i32) {
    %c0_i32 = arith.constant 0 : i32
    %c0_i32_0 = arith.constant 0 : i32
    %c0_i32_1 = arith.constant 0 : i32
    return %arg0, %c0_i32, %c0_i32_0 : i32, i32, i32
  }
  func.func @transform_1(%arg0: i32) -> (i32, i32) {
    %c0_i32 = arith.constant 0 : i32
    %c0_i32_0 = arith.constant 0 : i32
    %c0_i32_1 = arith.constant 0 : i32
    return %c0_i32, %c0_i32_0 : i32, i32
  }
  func.func @transform_2(%arg0: i32) -> (i32, i32) {
    %c0_i32 = arith.constant 0 : i32
    %c0_i32_0 = arith.constant 0 : i32
    %c0_i32_1 = arith.constant 0 : i32
    return %c0_i32, %c0_i32_0 : i32, i32
  }
  func.func @transform_3(%arg0: i32) -> (i32, i32) {
    %c0_i32 = arith.constant 0 : i32
    %c0_i32_0 = arith.constant 0 : i32
    %c0_i32_1 = arith.constant 0 : i32
    return %c0_i32, %c0_i32_0 : i32, i32
  }
  func.func @transform_4(%arg0: i32) -> (i32, i32, i32) {
    %c0_i32 = arith.constant 0 : i32
    %c0_i32_0 = arith.constant 0 : i32
    %c0_i32_1 = arith.constant 0 : i32
    return %arg0, %c0_i32, %c0_i32_0 : i32, i32, i32
  }
}

</mosaic_0001>

<llo_original>
// kernel: tpu_custom_call.1
$region0: #{tpu_custom_call.1}
  #allocation0 [shape = 'u32[]', space=smem, size = 0x4, offset = 0x4, fixed_abs, tag = 'smem constant byte address 0x4 - core index']
  #allocation1 [shape = 'u32[144,128]{1,0:T(1,128)}', space=vmem, size = 0x12000, scoped, tag = 'internal scratch']
  %s0 = inlined_call_operand.vmem [shape: f32[2,4,256], index: 0, kind: input, shape index: {}]
  %s1 = inlined_call_operand.vmem [shape: f32[4,3], index: 1, kind: input, shape index: {}]
  %s2 = inlined_call_operand.vmem [shape: f32[8,4], index: 2, kind: input, shape index: {}]
  %s3 = inlined_call_operand.vmem [shape: f32[8,1], index: 3, kind: input, shape index: {}]
  %s4 = inlined_call_operand.hbm [shape: f32[2,8,128], index: 4, kind: output, shape index: {}]
  %s5 = sld [smem:[#allocation0]]
  $region49: #{tpu_custom_call.1} parent=0
    _
  %s7 = ssub.s32 1, %s5
  %s8 = scalar_select 0, %s7, %s5
  $region1: #{tpu_custom_call.1} parent=0
    #allocation2 [shape = 'u8[8192]{0}', space=vmem, size = 0x2000, scoped, tag = 'output window, operand 0']
    #allocation3 [shape = 's32[2]{0}', space=sflag, size = 0x8, scoped, tag = 'scoped memory for tpu_custom_call.1']
    %9 = vsyncpa [#allocation3], 0
    %s10 = scalar_lea.sflag [#allocation3], 1
    %11 = vsyncpa %s10, 0
    loop: start=0, step=1, limit=4
    $region2: #{tpu_custom_call.1} parent=1 // loop_pre_header
      _
    $region3: #{tpu_custom_call.1} parent=1 // loop_header
      %s13 = sphi 0, %s17
      %p14 = scmp.ge.s32.totalorder %s13, 4
      %s23 = sphi 0, %s25
      %s26 = sphi 0, %s23
      %s27 = sphi 0, %s26
      %s43 = sphi 0, %s27
      %s47 = sphi 0, %s47
      %s49 = sphi 0, %s47
      %s50 = sphi 0, %s49
      %s64 = sphi 0, %s50
      %s68 = sphi 0, %s68
      %s70 = sphi 0, %s68
      %s71 = sphi 0, %s70
      %s85 = sphi 0, %s71
      %s89 = sphi 0, %s89
      %s91 = sphi 0, %s89
      %s92 = sphi 0, %s91
      %s106 = sphi 0, %s92
      %s112 = sphi 0, %s114
      %s115 = sphi 0, %s112
      %s116 = sphi 0, %s115
      %s132 = sphi 0, %s116
    $region4: #{tpu_custom_call.1} parent=1 // loop_header_branch
      %16 = sbr.rel (%p14) target = $region8
    $region5: #{tpu_custom_call.1} parent=1 // loop_body
      %s18 = ssub.s32 %s13, 1
      %s19 = ssub.s32 %s13, 2
      %s20 = sadd.s32 %s13, 1
      %s21 = ssub.s32 %s13, %s20
      %p22 = scmp.eq.s32.totalorder %s21, 0
      %s24 = sadd.s32 %s23, 1
      %s25 = scalar_select %p22, %s23, %s24
      %p28 = pneg %p22
      %p29 = scmp.eq.s32.totalorder %s13, 1
      %p30 = por %p28, %p29
      %p31 = scmp.ne.s32.totalorder %s23, %s26
      %p32 = scmp.eq.s32.totalorder %s13, 0
      %p33 = por %p31, %p32
      %p34 = scmp.ne.s32.totalorder %s23, %s26
      %p35 = scmp.eq.s32.totalorder %s18, 1
      %p36 = por %p34, %p35
      %p37 = scmp.ne.s32.totalorder %s26, %s27
      %p38 = scmp.eq.s32.totalorder %s18, 0
      %p39 = por %p37, %p38
      %p40 = scmp.ne.s32.totalorder %s26, %s27
      %p41 = scmp.eq.s32.totalorder %s19, 1
      %p42 = por %p40, %p41
      %p44 = scmp.ne.s32.totalorder %s27, %s43
      %p45 = scmp.eq.s32.totalorder %s19, 0
      %p46 = por %p44, %p45
      %s48 = sadd.s32 %s47, 1
      %p51 = scmp.eq.s32.totalorder %s13, 1
      %p52 = scmp.ne.s32.totalorder %s47, %s49
      %p53 = scmp.eq.s32.totalorder %s13, 0
      %p54 = por %p52, %p53
      %p55 = scmp.ne.s32.totalorder %s47, %s49
      %p56 = scmp.eq.s32.totalorder %s18, 1
      %p57 = por %p55, %p56
      %p58 = scmp.ne.s32.totalorder %s49, %s50
      %p59 = scmp.eq.s32.totalorder %s18, 0
      %p60 = por %p58, %p59
      %p61 = scmp.ne.s32.totalorder %s49, %s50
      %p62 = scmp.eq.s32.totalorder %s19, 1
      %p63 = por %p61, %p62
      %p65 = scmp.ne.s32.totalorder %s50, %s64
      %p66 = scmp.eq.s32.totalorder %s19, 0
      %p67 = por %p65, %p66
      %s69 = sadd.s32 %s68, 1
      %p72 = scmp.eq.s32.totalorder %s13, 1
      %p73 = scmp.ne.s32.totalorder %s68, %s70
      %p74 = scmp.eq.s32.totalorder %s13, 0
      %p75 = por %p73, %p74
      %p76 = scmp.ne.s32.totalorder %s68, %s70
      %p77 = scmp.eq.s32.totalorder %s18, 1
      %p78 = por %p76, %p77
      %p79 = scmp.ne.s32.totalorder %s70, %s71
      %p80 = scmp.eq.s32.totalorder %s18, 0
      %p81 = por %p79, %p80
      %p82 = scmp.ne.s32.totalorder %s70, %s71
      %p83 = scmp.eq.s32.totalorder %s19, 1
      %p84 = por %p82, %p83
      %p86 = scmp.ne.s32.totalorder %s71, %s85
      %p87 = scmp.eq.s32.totalorder %s19, 0
      %p88 = por %p86, %p87
      %s90 = sadd.s32 %s89, 1
      %p93 = scmp.eq.s32.totalorder %s13, 1
      %p94 = scmp.ne.s32.totalorder %s89, %s91
      %p95 = scmp.eq.s32.totalorder %s13, 0
      %p96 = por %p94, %p95
      %p97 = scmp.ne.s32.totalorder %s89, %s91
      %p98 = scmp.eq.s32.totalorder %s18, 1
      %p99 = por %p97, %p98
      %p100 = scmp.ne.s32.totalorder %s91, %s92
      %p101 = scmp.eq.s32.totalorder %s18, 0
      %p102 = por %p100, %p101
      %p103 = scmp.ne.s32.totalorder %s91, %s92
      %p104 = scmp.eq.s32.totalorder %s19, 1
      %p105 = por %p103, %p104
      %p107 = scmp.ne.s32.totalorder %s92, %s106
      %p108 = scmp.eq.s32.totalorder %s19, 0
      %p109 = por %p107, %p108
      %s110 = ssub.s32 %s13, %s20
      %p111 = scmp.eq.s32.totalorder %s110, 0
      %s113 = sadd.s32 %s112, 1
      %s114 = scalar_select %p111, %s112, %s113
      %p117 = pneg %p111
      %p118 = scmp.eq.s32.totalorder %s13, 1
      %p119 = por %p117, %p118
      %p120 = scmp.ne.s32.totalorder %s112, %s115
      %p121 = scmp.eq.s32.totalorder %s13, 0
      %p122 = por %p120, %p121
      %p123 = scmp.ne.s32.totalorder %s112, %s115
      %p124 = scmp.eq.s32.totalorder %s18, 1
      %p125 = por %p123, %p124
      %p126 = scmp.ne.s32.totalorder %s115, %s116
      %p127 = scmp.eq.s32.totalorder %s18, 0
      %p128 = por %p126, %p127
      %p129 = scmp.ne.s32.totalorder %s115, %s116
      %p130 = scmp.eq.s32.totalorder %s19, 1
      %p131 = por %p129, %p130
      %p133 = scmp.ne.s32.totalorder %s116, %s132
      %p134 = scmp.eq.s32.totalorder %s19, 0
      %p135 = por %p133, %p134
      %p136 = scmp.le.s32.totalorder 1, %s13
      %p137 = scmp.lt.s32.totalorder %s13, 3
      %p138 = pnand %p136, %p137
      %p139 = pneg %p138
      // Predicated region
      $region9: #{tpu_custom_call.1} parent=5 // pred_check
        _
      $region10: #{tpu_custom_call.1} parent=5 // pred_check_branch
        %141 = sbr.rel (%p138) target = $region12
      $region11: #{tpu_custom_call.1} parent=5 // pred_region
        %s142 = ssub.s32 %s13, 1
        // Predicated region
        $region13: #{tpu_custom_call.1} parent=11 // pred_check
          %p143 = pneg %p60
        $region14: #{tpu_custom_call.1} parent=11 // pred_check_branch
          %145 = sbr.rel (%p143) target = $region16
        $region15: #{tpu_custom_call.1} parent=11 // pred_region
          _
        $region16: #{tpu_custom_call.1} parent=11 // pred_fallthru
          _
        // Predicated region
        $region17: #{tpu_custom_call.1} parent=11 // pred_check
          %p146 = pneg %p81
        $region18: #{tpu_custom_call.1} parent=11 // pred_check_branch
          %148 = sbr.rel (%p146) target = $region20
        $region19: #{tpu_custom_call.1} parent=11 // pred_region
          _
        $region20: #{tpu_custom_call.1} parent=11 // pred_fallthru
          _
        // Predicated region
        $region21: #{tpu_custom_call.1} parent=11 // pred_check
          %p149 = pneg %p102
        $region22: #{tpu_custom_call.1} parent=11 // pred_check_branch
          %151 = sbr.rel (%p149) target = $region24
        $region23: #{tpu_custom_call.1} parent=11 // pred_region
          _
        $region24: #{tpu_custom_call.1} parent=11 // pred_fallthru
          _
      $region12: #{tpu_custom_call.1} parent=5 // pred_fallthru
        _
      %p152 = scmp.lt.s32.totalorder %s13, 2
      // Predicated region
      $region25: #{tpu_custom_call.1} parent=5 // pred_check
        %p153 = pneg %p152
      $region26: #{tpu_custom_call.1} parent=5 // pred_check_branch
        %155 = sbr.rel (%p153) target = $region28
      $region27: #{tpu_custom_call.1} parent=5 // pred_region
        // Predicated region
        $region29: #{tpu_custom_call.1} parent=27 // pred_check
          %p156 = pneg %p33
        $region30: #{tpu_custom_call.1} parent=27 // pred_check_branch
          %158 = sbr.rel (%p156) target = $region32
        $region31: #{tpu_custom_call.1} parent=27 // pred_region
          %p159 = scmp.lt.s32.totalorder %s13, 1
          %s160 = scalar_select %p159, %s13, 1
          %s161 = smul.addr %s160, 2
          %s162 = smul.addr %s161, 4
          %s163 = scalar_lea.vmem %s0, %s162
        $region32: #{tpu_custom_call.1} parent=27 // pred_fallthru
          _
      $region28: #{tpu_custom_call.1} parent=5 // pred_fallthru
        _
      %p164 = scmp.le.s32.totalorder 1, %s13
      %p165 = scmp.lt.s32.totalorder %s13, 3
      %p166 = pnand %p164, %p165
      %p167 = pneg %p166
      // Predicated region
      $region33: #{tpu_custom_call.1} parent=5 // pred_check
        _
      $region34: #{tpu_custom_call.1} parent=5 // pred_check_branch
        %169 = sbr.rel (%p166) target = $region36
      $region35: #{tpu_custom_call.1} parent=5 // pred_region
        %s170 = ssub.s32 %s13, 1
        %p171 = scmp.lt.s32.totalorder %s18, 1
        %s172 = scalar_select %p171, %s18, 1
        %s173 = smul.addr %s172, 2
        %s174 = smul.addr %s173, 4
        %s175 = scalar_lea.vmem %s0, %s174
        %p176 = pneg %p39
        %p177 = pneg %p36
        %p178 = pneg %p60
        %p179 = pneg %p57
        %p180 = pneg %p81
        %p181 = pneg %p78
        %p182 = pneg %p102
        %p183 = pneg %p99
        %p184 = pneg %p128
        %p185 = pneg %p125
        %s186 = sand.u32 %s115, 1
        %s187 = scalar_lea.sflag [#allocation3], %s186
        %s188 = sand.u32 %s115, 1
        %s189 = smul.addr %s188, 8
        %s190 = scalar_lea.vmem [#allocation2], %s189
        %p191 = scmp.lt.s32.totalorder %s18, 1
        %s192 = scalar_select %p191, %s18, 1
        %s193 = smul.addr %s192, 2
        %s194 = smul.addr %s193, 4
        %s195 = scalar_lea.vmem %s0, %s194
        %v196 = vld [vmem:[%s1] sm:$0xf]
        %v197 = vld [vmem:[%s195] sm:$0xf]
        %199 = vset.pattern.permute.xlu0 0
        %200 = vperm.xlu0 %199, %v196
        %v201 = vpop.permute.xlu0 %200
        %v203 = vmul.f32 %v197, %v201
        %v204 = vadd.f32 %v203, 0.0
        %v205 = vld [vmem:[%s195] sm:$0xff]
        %206 = vset.pattern.permute.xlu0 1
        %207 = vperm.xlu0 %206, %v196
        %v208 = vpop.permute.xlu0 %207
        %v210 = vmul.f32 %v205, %v208
        %212 = vrot.lane.b32.xlu0 %v210, 127
        %v213 = vpop.permute.xlu0 %212
        %v214 = vrot.slane %v213, 4
        %vm215 = vcmask 1039360
        %v216 = vsel %vm215, %v213, %v214
        %v218 = vadd.f32 %v204, %v216
        %219 = vset.pattern.permute.xlu0 2
        %220 = vperm.xlu0 %219, %v196
        %v221 = vpop.permute.xlu0 %220
        %v223 = vmul.f32 %v205, %v221
        %225 = vrot.lane.b32.xlu0 %v223, 126
        %v226 = vpop.permute.xlu0 %225
        %v227 = vrot.slane %v226, 4
        %vm228 = vcmask 1031168
        %v229 = vsel %vm228, %v226, %v227
        %v231 = vadd.f32 %v218, %v229
        %v232 = vld [vmem:[%s2] sm:$0xff]
        %v233 = vld [vmem:[%s3] sm:$0xff]
        %235 = vset.pattern.permute.xlu0 0
        %236 = vperm.xlu0 %235, %v233
        %v237 = vpop.permute.xlu0 %236
        %vm239 = vcmask 31744
        %v241 = vsel %vm239, %v232, 0
        %vm243 = vcmask 1043456
        %v245 = vsel %vm243, %v231, 0
        %247 = vmatprep.subr.mxu0 0.0
        %248 = vmatpush1.msra.mxu0 0.0
        %249 = vmatprep.subr.mxu0 0.0
        %250 = vmatpush1.msra.mxu0 0.0
        %251 = vmatprep.subr.mxu0 0.0
        %252 = vmatpush1.msra.mxu0 0.0
        %253 = vmatprep.subr.mxu0 0.0
        %254 = vmatpush1.msra.mxu0 0.0
        %255 = vmatprep.subr.mxu0 0.0
        %256 = vmatpush1.msra.mxu0 0.0
        %257 = vmatprep.subr.mxu0 0.0
        %258 = vmatpush1.msra.mxu0 0.0
        %259 = vmatprep.subr.mxu0 0.0
        %260 = vmatpush1.msra.mxu0 0.0
        %261 = vmatprep.subr.mxu0 0.0
        %262 = vmatpush1.msra.mxu0 0.0
        %263 = vmatprep.subr.mxu0 0.0
        %264 = vmatpush1.msra.mxu0 0.0
        %265 = vmatprep.subr.mxu0 0.0
        %266 = vmatpush1.msra.mxu0 0.0
        %267 = vmatprep.subr.mxu0 0.0
        %268 = vmatpush1.msra.mxu0 0.0
        %269 = vmatprep.subr.mxu0 0.0
        %270 = vmatpush1.msra.mxu0 0.0
        %271 = vmatprep.subr.mxu0 0.0
        %272 = vmatpush1.msra.mxu0 0.0
        %273 = vmatprep.subr.mxu0 0.0
        %274 = vmatpush1.msra.mxu0 0.0
        %275 = vmatprep.subr.mxu0 0.0
        %276 = vmatpush1.msra.mxu0 0.0
        %277 = vmatprep.subr.mxu0 0.0
        %278 = vmatpush1.msra.mxu0 %v245
        %279 = vmatprep.subr.mxu0 0.0
        %280 = vmatpush2.msra.mxu0 0.0
        %281 = vmatprep.subr.mxu0 0.0
        %282 = vmatpush2.msra.mxu0 0.0
        %283 = vmatprep.subr.mxu0 0.0
        %284 = vmatpush2.msra.mxu0 0.0
        %285 = vmatprep.subr.mxu0 0.0
        %286 = vmatpush2.msra.mxu0 0.0
        %287 = vmatprep.subr.mxu0 0.0
        %288 = vmatpush2.msra.mxu0 0.0
        %289 = vmatprep.subr.mxu0 0.0
        %290 = vmatpush2.msra.mxu0 0.0
        %291 = vmatprep.subr.mxu0 0.0
        %292 = vmatpush2.msra.mxu0 0.0
        %293 = vmatprep.subr.mxu0 0.0
        %294 = vmatpush2.msra.mxu0 0.0
        %295 = vmatprep.subr.mxu0 0.0
        %296 = vmatpush2.msra.mxu0 0.0
        %297 = vmatprep.subr.mxu0 0.0
        %298 = vmatpush2.msra.mxu0 0.0
        %299 = vmatprep.subr.mxu0 0.0
        %300 = vmatpush2.msra.mxu0 0.0
        %301 = vmatprep.subr.mxu0 0.0
        %302 = vmatpush2.msra.mxu0 0.0
        %303 = vmatprep.subr.mxu0 0.0
        %304 = vmatpush2.msra.mxu0 0.0
        %305 = vmatprep.subr.mxu0 0.0
        %306 = vmatpush2.msra.mxu0 0.0
        %307 = vmatprep.subr.mxu0 0.0
        %308 = vmatpush2.msra.mxu0 0.0
        %309 = vmatprep.subr.mxu0 0.0
        %310 = vmatpush2.msra.mxu0 0.0
        %311 = vmatprep.mubr.f32.mxu0 0.0
        %312 = vmatmul.mubr.f32.gmra.mxu0 %v241
        %v313 = vpop.f32.mrf.mxu0
        %v314 = vadd.f32 %v237, %v313
        %v315 = vpop.f32.mrf.mxu0
        %316 = vdwg.mxu0
        %317 = vst [vmem:[%s190] sm:$0xff] %v314
        %s318 = sand.u32 %s115, 1
        %s319 = scalar_lea.sflag [#allocation3], %s318
        %s320 = sand.u32 %s115, 1
        %s321 = smul.addr %s320, 8
        %s322 = scalar_lea.vmem [#allocation2], %s321
        // Predicated region
        $region37: #{tpu_custom_call.1} parent=35 // pred_check
          %p323 = pneg %p125
        $region38: #{tpu_custom_call.1} parent=35 // pred_check_branch
          %325 = sbr.rel (%p323) target = $region40
        $region39: #{tpu_custom_call.1} parent=35 // pred_region
          %s327 = ssub.s32 128, 128
          %328 = vsyncadd %s319, %s327
          %s329 = smul.addr %s18, 128
          %s330 = scalar_lea.hbm %s4, %s329
          %s332 = sshll.u32 %s322, 4
          %s333 = int_to_ptr.vmem [resolvable:$true] %s332
          %335 = dma.vmem_to_hbm [thread:$0]  %s333, 128, %s330, %s319
        $region40: #{tpu_custom_call.1} parent=35 // pred_fallthru
          _
      $region36: #{tpu_custom_call.1} parent=5 // pred_fallthru
        _
      %p336 = scmp.le.s32.totalorder 2, %s13
      // Predicated region
      $region41: #{tpu_custom_call.1} parent=5 // pred_check
        %p337 = pneg %p336
      $region42: #{tpu_custom_call.1} parent=5 // pred_check_branch
        %339 = sbr.rel (%p337) target = $region44
      $region43: #{tpu_custom_call.1} parent=5 // pred_region
        %s340 = ssub.s32 %s13, 2
        // Predicated region
        $region45: #{tpu_custom_call.1} parent=43 // pred_check
          %p341 = pneg %p131
        $region46: #{tpu_custom_call.1} parent=43 // pred_check_branch
          %343 = sbr.rel (%p341) target = $region48
        $region47: #{tpu_custom_call.1} parent=43 // pred_region
          %s344 = sand.u32 %s116, 1
          %s345 = scalar_lea.sflag [#allocation3], %s344
          %s346 = sand.u32 %s116, 1
          %s347 = smul.addr %s346, 8
          %s348 = scalar_lea.vmem [#allocation2], %s347
          %349 = dma.done %s345, 128
        $region48: #{tpu_custom_call.1} parent=43 // pred_fallthru
          _
      $region44: #{tpu_custom_call.1} parent=5 // pred_fallthru
        _
    $region6: #{tpu_custom_call.1} parent=1 // loop_footer
      %s17 = sadd.s32 1, %s13
    $region7: #{tpu_custom_call.1} parent=1 // loop_footer_branch
      %12 = sbr.rel target = $region3
    $region8: #{tpu_custom_call.1} parent=1 // loop_exit
      _
    %350 = vsyncpa [#allocation3], 1
    %s351 = scalar_lea.sflag [#allocation3], 1
    %352 = vsyncpa %s351, 1

</llo_original>
